<compile_context>
chip_gen: v7x
topology: tpu7x:2x2x1
jax: 0.10.0
libtpu: 0.0.40
codegen_flags: <defaults>
</compile_context>

<pallas_src>
import functools

import jax
import jax.numpy as jnp
from jax import lax
from jax.experimental import pallas as pl
from jax.experimental.pallas import tpu as pltpu


def _asp_kernel(x_ref, w1_ref, b1_ref, w2_ref, b2_ref, out_ref,
                m_ref, l_ref, s1_ref, s2_ref, *, t_real, t_total):
    # x_ref  : (Bblk, D, Tblk) f32       -- native NCW layout straight from HBM
    # w1_ref : (128, D)  matmul dtype    -- Conv1d(D->128, k=1) weight
    # b1_ref : (128, 1)  f32
    # w2_ref : (D, 128)  matmul dtype    -- Conv1d(128->D) weight, BN scale folded
    # b2_ref : (D, 1)    f32             -- bias with BN shift folded in
    # out_ref: (Bblk, 2*D, 1)            -- [mu ; sg], written on the last T tile
    # m/l/s1/s2_ref : (Bblk, D, 1) VMEM  -- online-softmax accumulators
    b_blk, d, t_blk = x_ref.shape
    ti = pl.program_id(1)
    last_ti = pl.num_programs(1) - 1
    cdt = w1_ref.dtype

    # ---- init accumulators on the first T tile of each batch block ----------
    @pl.when(ti == 0)
    def _init():
        m_ref[...] = jnp.full(m_ref.shape, -jnp.inf, m_ref.dtype)
        l_ref[...] = jnp.zeros(l_ref.shape, l_ref.dtype)
        s1_ref[...] = jnp.zeros(s1_ref.shape, s1_ref.dtype)
        s2_ref[...] = jnp.zeros(s2_ref.shape, s2_ref.dtype)

    # ---- tail mask (only generated when the wrapper padded T) ---------------
    if t_real != t_total:
        col = ti * t_blk + lax.broadcasted_iota(jnp.int32, (1, t_blk), 1)
        valid = col < t_real                       # (1, Tblk) bool
    else:
        valid = None

    # ---- attention MLP + online softmax stats, all in the native layout -----
    for b in range(b_blk):                         # static unroll, Bblk small
        x_b = x_ref[b]                             # (D, Tblk) f32
        h = jnp.dot(w1_ref[...], x_b.astype(cdt),
                    preferred_element_type=jnp.float32) + b1_ref[...]
        h = jnp.maximum(h, 0.0)                    # ReLU (BN folded into w2/b2)
        logits = jnp.dot(w2_ref[...], h.astype(cdt),
                         preferred_element_type=jnp.float32) + b2_ref[...]
        if valid is not None:
            logits = jnp.where(valid, logits, -1e30)

        m_prev = m_ref[b]                                        # (D, 1)
        m_new = jnp.maximum(m_prev, jnp.max(logits, axis=-1, keepdims=True))
        corr = jnp.exp(m_prev - m_new)                           # rescale old sums
        e = jnp.exp(logits - m_new)                              # (D, Tblk)
        xe = x_b * e
        l_ref[b] = corr * l_ref[b] + jnp.sum(e, axis=-1, keepdims=True)
        s1_ref[b] = corr * s1_ref[b] + jnp.sum(xe, axis=-1, keepdims=True)
        s2_ref[b] = corr * s2_ref[b] + jnp.sum(x_b * xe, axis=-1, keepdims=True)
        m_ref[b] = m_new

    # ---- finalize on the last T tile: vectorized, relayout-free stores ------
    @pl.when(ti == last_ti)
    def _finalize():
        inv_l = 1.0 / l_ref[...]                                 # (Bblk, D, 1)
        mu = s1_ref[...] * inv_l
        sg = jnp.sqrt(jnp.maximum(s2_ref[...] * inv_l - mu * mu, 1e-5))
        out_ref[:, :d, :] = mu
        out_ref[:, d:, :] = sg


def _largest_divisor_leq(n, cap):
    cap = int(max(1, min(n, cap)))
    for c in range(cap, 0, -1):
        if n % c == 0:
            return c
    return 1


def _vmem_capacity_bytes():
    try:
        return int(pltpu.get_tpu_info().vmem_capacity_bytes)
    except Exception:
        return 64 * 1024 * 1024          # conservative fallback (v7x per-TC)


def asp_forward(x, params, matmul_dtype=jnp.float32):
    """x: (B, C, H, T) float32 (PyTorch NCHW-style conv feature map)."""
    B = int(x.shape[0])
    T = int(x.shape[-1])
    x_bdt = x.reshape(B, -1, T)          # (B, D, T): free reshape, NO transpose
    D = int(x_bdt.shape[1])

    # Fold eval-mode BatchNorm1d(128) into the second 1x1 conv (exact algebra):
    #   w2 @ (s*relu(z) + t) + b2 = (w2 * s) @ relu(z) + (w2 @ t + b2)
    s = params["gamma"] / jnp.sqrt(params["running_var"] + 1e-5)       # (128,)
    t = params["beta"] - params["running_mean"] * s                    # (128,)
    w1 = params["w1"].astype(matmul_dtype)                             # (128, D)
    b1 = params["b1"].reshape(-1, 1).astype(jnp.float32)               # (128, 1)
    w2 = (params["w2"] * s[None, :]).astype(matmul_dtype)              # (D, 128)
    b2 = (params["w2"] @ t + params["b2"]).reshape(-1, 1).astype(jnp.float32)

    # ---- generation-aware block sizing --------------------------------------
    vmem_cap = _vmem_capacity_bytes()
    small_vmem = vmem_cap <= 64 * 1024 * 1024      # v7x-like: 64 MiB/TC, 2 TCs
    if small_vmem:
        max_block_bytes = 3 * 1024 * 1024
        vmem_limit = 48 * 1024 * 1024              # leave compiler headroom
        t_blk_max = 1024
    else:                                          # v5e / v6e: 128 MiB VMEM
        max_block_bytes = 8 * 1024 * 1024
        vmem_limit = 96 * 1024 * 1024
        t_blk_max = 2048

    # Batch block: largest divisor of B (<= 8).  Only on 2-TensorCore parts do
    # we force >= 2 parallel batch grid steps; on 1-TC parts the grid is a
    # serial loop and bigger blocks win.
    b_blk = _largest_divisor_leq(B, 8)
    if small_vmem and B > 1 and B // b_blk < 2:
        b_blk = _largest_divisor_leq(B, max(1, B // 2))

    # T tile: multiple of 128 (lane-dense elementwise/softmax work), sized to
    # the block-byte budget; T is padded to a tile multiple, tail masked.
    t_need = pl.cdiv(T, 128) * 128
    t_cap = max(128, (max_block_bytes // (4 * D * b_blk)) // 128 * 128)
    t_blk = min(t_blk_max, t_need, t_cap)
    # Keep the x block and the (lane-padded) accumulators within budget.
    while b_blk > 1 and (b_blk * D * t_blk * 4 > max_block_bytes
                         or 4 * b_blk * D * 128 * 4 > max_block_bytes):
        b_blk = _largest_divisor_leq(B, b_blk - 1)

    t_pad = pl.cdiv(T, t_blk) * t_blk
    if t_pad != T:
        x_bdt = jnp.pad(x_bdt, ((0, 0), (0, 0), (0, t_pad - T)))

    grid = (B // b_blk, t_pad // t_blk)
    # NOTE: the weight/bias blocks have constant index maps; at very large D on
    # v7x, single-buffering them (pipeline_mode=pl.Buffered(1)) saves VMEM.
    const = lambda shape: pl.BlockSpec(shape, lambda bi, ti: tuple(0 for _ in shape))

    out = pl.pallas_call(
        functools.partial(_asp_kernel, t_real=T, t_total=t_pad),
        out_shape=jax.ShapeDtypeStruct((B, 2 * D, 1), jnp.float32),
        grid_spec=pltpu.PrefetchScalarGridSpec(
            num_scalar_prefetch=0,
            grid=grid,
            in_specs=[
                pl.BlockSpec((b_blk, D, t_blk), lambda bi, ti: (bi, 0, ti)),  # x
                const((128, D)),       # w1
                const((128, 1)),       # b1
                const((D, 128)),       # w2 (BN scale folded in)
                const((D, 1)),         # b2 (BN shift folded in)
            ],
            out_specs=pl.BlockSpec((b_blk, 2 * D, 1), lambda bi, ti: (bi, 0, 0)),
            scratch_shapes=[pltpu.VMEM((b_blk, D, 1), jnp.float32)] * 4,  # m,l,s1,s2
        ),
        compiler_params=pltpu.CompilerParams(
            dimension_semantics=("parallel", "arbitrary"),
            vmem_limit_bytes=vmem_limit,
        ),
    )(x_bdt, w1, b1, w2, b2)
    return out.reshape(B, 2 * D)


def asp_reference(x, params):
    """Pure-JAX reference mirroring the PyTorch forward (BN in eval mode)."""
    B = x.shape[0]
    T = x.shape[-1]
    x2 = x.reshape(B, -1, T)                                     # (B, D, T)
    h = jnp.einsum("od,bdt->bot", params["w1"], x2) + params["b1"][None, :, None]
    h = jnp.maximum(h, 0.0)
    inv = 1.0 / jnp.sqrt(params["running_var"] + 1e-5)
    h = (h - params["running_mean"][None, :, None]) * inv[None, :, None]
    h = h * params["gamma"][None, :, None] + params["beta"][None, :, None]
    a = jnp.einsum("do,bot->bdt", params["w2"], h) + params["b2"][None, :, None]
    w = jax.nn.softmax(a, axis=2)
    mu = jnp.sum(x2 * w, axis=2)
    sg = jnp.sqrt(jnp.clip(jnp.sum(x2 * x2 * w, axis=2) - mu * mu, 1e-5, None))
    return jnp.concatenate([mu, sg], axis=1)


def init_params(key, D):
    k1, k2, k3, k4 = jax.random.split(key, 4)
    return {
        # Conv1d(D, 128, k=1): weight (128, D), bias (128,)
        "w1": jax.random.normal(k1, (128, D), jnp.float32) * 0.05,
        "b1": jax.random.normal(k2, (128,), jnp.float32) * 0.05,
        # BatchNorm1d(128), eval mode
        "gamma": jnp.ones((128,), jnp.float32),
        "beta": jnp.zeros((128,), jnp.float32),
        "running_mean": jnp.zeros((128,), jnp.float32),
        "running_var": jnp.ones((128,), jnp.float32),
        # Conv1d(128, D, k=1): weight (D, 128), bias (D,)
        "w2": jax.random.normal(k3, (D, 128), jnp.float32) * 0.05,
        "b2": jax.random.normal(k4, (D,), jnp.float32) * 0.05,
    }


if __name__ == "__main__":
    key = jax.random.PRNGKey(0)
    in_planes, acoustic_dim = 2, 16
    outmap_size = acoustic_dim // 8
    D = in_planes * 8 * outmap_size                     # 32

    # Case 1: tiny module-consistent shapes; T=16 pads to one 128-wide tile and
    # exercises the in-kernel tail mask.
    B, T = 2, 16
    kx, kp, key = jax.random.split(key, 3)
    x = jax.random.normal(kx, (B, in_planes * 8, outmap_size, T), jnp.float32)
    params = init_params(kp, D)
    out = jax.block_until_ready(asp_forward(x, params))
    ref = asp_reference(x, params)
    assert out.shape == (B, 2 * D)
    assert jnp.allclose(out, ref, atol=1e-4, rtol=1e-4)

    # Case 2: multi-tile online softmax over T plus a partially-valid masked
    # last tile (T=3000 -> >=2 T tiles on every generation's block heuristic).
    B2, T2 = 4, 3000
    kx2, kp2, key = jax.random.split(key, 3)
    x2 = jax.random.normal(kx2, (B2, in_planes * 8, outmap_size, T2), jnp.float32)
    params2 = init_params(kp2, D)
    out2 = jax.block_until_ready(asp_forward(x2, params2))
    ref2 = asp_reference(x2, params2)
    assert out2.shape == (B2, 2 * D)
    assert jnp.allclose(out2, ref2, atol=1e-4, rtol=1e-4)

    # Case 3: bf16 matmul operands for the attention MLP (pooled statistics
    # stay f32) -- the faster MXU path, checked at a looser tolerance.
    out3 = jax.block_until_ready(asp_forward(x2, params2, matmul_dtype=jnp.bfloat16))
    assert out3.shape == (B2, 2 * D)
    assert jnp.allclose(out3, ref2, atol=2e-2, rtol=2e-2)

    print("KERNEL_OK")
</pallas_src>

<mosaic_0001>
module attributes {stable_mosaic.version = 11 : i64} {
  func.func @_asp_kernel(%arg0: i32, %arg1: i32, %arg2: memref<1x32x128xf32, #tpu.memory_space<vmem>>, %arg3: memref<128x32xf32, #tpu.memory_space<vmem>>, %arg4: memref<128x1xf32, #tpu.memory_space<vmem>>, %arg5: memref<32x128xf32, #tpu.memory_space<vmem>>, %arg6: memref<32x1xf32, #tpu.memory_space<vmem>>, %arg7: memref<1x64x1xf32, #tpu.memory_space<vmem>>, %arg8: memref<1x32x1xf32, #tpu.memory_space<vmem>>, %arg9: memref<1x32x1xf32, #tpu.memory_space<vmem>>, %arg10: memref<1x32x1xf32, #tpu.memory_space<vmem>>, %arg11: memref<1x32x1xf32, #tpu.memory_space<vmem>>) attributes {dimension_semantics = [#tpu.dimension_semantics<parallel>, #tpu.dimension_semantics<arbitrary>], iteration_bounds = array<i64: 2, 1>, scalar_prefetch = 0 : i64, scratch_operands = 4 : i64, tpu.core_type = #tpu.core_type<tc>, window_params = [{transform_indices = @transform_0, window_bounds = array<i64: 1, 32, 128>}, {pipeline_mode = #tpu.pipeline_mode<synchronous>, transform_indices = @transform_1, window_bounds = array<i64: 128, 32>}, {pipeline_mode = #tpu.pipeline_mode<synchronous>, transform_indices = @transform_2, window_bounds = array<i64: 128, 1>}, {pipeline_mode = #tpu.pipeline_mode<synchronous>, transform_indices = @transform_3, window_bounds = array<i64: 32, 128>}, {pipeline_mode = #tpu.pipeline_mode<synchronous>, transform_indices = @transform_4, window_bounds = array<i64: 32, 1>}, {transform_indices = @transform_5, window_bounds = array<i64: 1, 64, 1>}]} {
    %c0_i32 = arith.constant 0 : i32
    %0 = arith.cmpi eq, %arg1, %c0_i32 : i32
    %1 = arith.extui %0 : i1 to i32
    %c0_i32_0 = arith.constant 0 : i32
    %2 = arith.cmpi ne, %1, %c0_i32_0 : i32
    scf.if %2 {
      %cst_44 = arith.constant 0xFF800000 : f32
      %72 = vector.broadcast %cst_44 : f32 to vector<1x32x1xf32>
      %c0_45 = arith.constant 0 : index
      %c0_46 = arith.constant 0 : index
      %c0_47 = arith.constant 0 : index
      %73 = vector.load %arg8[%c0_45, %c0_46, %c0_47] : memref<1x32x1xf32, #tpu.memory_space<vmem>>, vector<1x32x1xf32>
      tpu.vector_store %arg8[%c0_45, %c0_46, %c0_47], %72 {strides = array<i32>} : memref<1x32x1xf32, #tpu.memory_space<vmem>>, vector<1x32x1xf32>,
      %cst_48 = arith.constant 0.000000e+00 : f32
      %74 = vector.broadcast %cst_48 : f32 to vector<1x32x1xf32>
      %c0_49 = arith.constant 0 : index
      %c0_50 = arith.constant 0 : index
      %c0_51 = arith.constant 0 : index
      %75 = vector.load %arg9[%c0_49, %c0_50, %c0_51] : memref<1x32x1xf32, #tpu.memory_space<vmem>>, vector<1x32x1xf32>
      tpu.vector_store %arg9[%c0_49, %c0_50, %c0_51], %74 {strides = array<i32>} : memref<1x32x1xf32, #tpu.memory_space<vmem>>, vector<1x32x1xf32>,
      %cst_52 = arith.constant 0.000000e+00 : f32
      %76 = vector.broadcast %cst_52 : f32 to vector<1x32x1xf32>
      %c0_53 = arith.constant 0 : index
      %c0_54 = arith.constant 0 : index
      %c0_55 = arith.constant 0 : index
      %77 = vector.load %arg10[%c0_53, %c0_54, %c0_55] : memref<1x32x1xf32, #tpu.memory_space<vmem>>, vector<1x32x1xf32>
      tpu.vector_store %arg10[%c0_53, %c0_54, %c0_55], %76 {strides = array<i32>} : memref<1x32x1xf32, #tpu.memory_space<vmem>>, vector<1x32x1xf32>,
      %cst_56 = arith.constant 0.000000e+00 : f32
      %78 = vector.broadcast %cst_56 : f32 to vector<1x32x1xf32>
      %c0_57 = arith.constant 0 : index
      %c0_58 = arith.constant 0 : index
      %c0_59 = arith.constant 0 : index
      %79 = vector.load %arg11[%c0_57, %c0_58, %c0_59] : memref<1x32x1xf32, #tpu.memory_space<vmem>>, vector<1x32x1xf32>
      tpu.vector_store %arg11[%c0_57, %c0_58, %c0_59], %78 {strides = array<i32>} : memref<1x32x1xf32, #tpu.memory_space<vmem>>, vector<1x32x1xf32>,
    } else {
    }
    %c128_i32 = arith.constant 128 : i32
    %3 = arith.muli %arg1, %c128_i32 : i32
    %4 = tpu.iota {dimensions = array<i32: 1>} : vector<1x128xi32>
    %5 = vector.broadcast %3 : i32 to vector<1x128xi32>
    %6 = arith.addi %5, %4 : vector<1x128xi32>
    %c16_i32 = arith.constant 16 : i32
    %7 = vector.broadcast %c16_i32 : i32 to vector<1x128xi32>
    %8 = arith.cmpi slt, %6, %7 : vector<1x128xi32>
    %c0 = arith.constant 0 : index
    %c0_1 = arith.constant 0 : index
    %c0_2 = arith.constant 0 : index
    %9 = vector.load %arg2[%c0, %c0_1, %c0_2] : memref<1x32x128xf32, #tpu.memory_space<vmem>>, vector<1x32x128xf32>
    %10 = vector.shape_cast %9 : vector<1x32x128xf32> to vector<32x128xf32>
    %c0_3 = arith.constant 0 : index
    %c0_4 = arith.constant 0 : index
    %11 = vector.load %arg3[%c0_3, %c0_4] : memref<128x32xf32, #tpu.memory_space<vmem>>, vector<128x32xf32>
    %cst = arith.constant dense<0.000000e+00> : vector<128x128xf32>
    %12 = tpu.matmul %11, %10, %cst {dimension_numbers = #tpu.dot_dimension_numbers<[1], [0], [0], [1], [0, 0, 1, 1], [], []>} : vector<128x32xf32>, vector<32x128xf32>, vector<128x128xf32> -> vector<128x128xf32>
    %c0_5 = arith.constant 0 : index
    %c0_6 = arith.constant 0 : index
    %13 = vector.load %arg4[%c0_5, %c0_6] : memref<128x1xf32, #tpu.memory_space<vmem>>, vector<128x1xf32>
    %14 = vector.broadcast %13 : vector<128x1xf32> to vector<128x128xf32>
    %15 = arith.addf %12, %14 : vector<128x128xf32>
    %cst_7 = arith.constant 0.000000e+00 : f32
    %16 = vector.broadcast %cst_7 : f32 to vector<128x128xf32>
    %17 = arith.maximumf %15, %16 : vector<128x128xf32>
    %c0_8 = arith.constant 0 : index
    %c0_9 = arith.constant 0 : index
    %18 = vector.load %arg5[%c0_8, %c0_9] : memref<32x128xf32, #tpu.memory_space<vmem>>, vector<32x128xf32>
    %cst_10 = arith.constant dense<0.000000e+00> : vector<32x128xf32>
    %19 = tpu.matmul %18, %17, %cst_10 {dimension_numbers = #tpu.dot_dimension_numbers<[1], [0], [0], [1], [0, 0, 1, 1], [], []>} : vector<32x128xf32>, vector<128x128xf32>, vector<32x128xf32> -> vector<32x128xf32>
    %c0_11 = arith.constant 0 : index
    %c0_12 = arith.constant 0 : index
    %20 = vector.load %arg6[%c0_11, %c0_12] : memref<32x1xf32, #tpu.memory_space<vmem>>, vector<32x1xf32>
    %21 = vector.broadcast %20 : vector<32x1xf32> to vector<32x128xf32>
    %22 = arith.addf %19, %21 : vector<32x128xf32>
    %cst_13 = arith.constant -1.000000e+30 : f32
    %23 = vector.shape_cast %8 : vector<1x128xi1> to vector<1x128xi1>
    %24 = vector.broadcast %23 : vector<1x128xi1> to vector<32x128xi1>
    %25 = vector.broadcast %cst_13 : f32 to vector<32x128xf32>
    %26 = arith.select %24, %22, %25 : vector<32x128xi1>, vector<32x128xf32>
    %c0_14 = arith.constant 0 : index
    %c0_15 = arith.constant 0 : index
    %c0_16 = arith.constant 0 : index
    %27 = vector.load %arg8[%c0_14, %c0_15, %c0_16] : memref<1x32x1xf32, #tpu.memory_space<vmem>>, vector<1x32x1xf32>
    %28 = vector.shape_cast %27 : vector<1x32x1xf32> to vector<32x1xf32>
    %cst_17 = arith.constant dense<0xFF800000> : vector<32xf32>
    %29 = vector.multi_reduction <maximumf>, %26, %cst_17 [1] : vector<32x128xf32> to vector<32xf32>
    %30 = vector.shape_cast %29 : vector<32xf32> to vector<32x1xf32>
    %31 = arith.maximumf %28, %30 : vector<32x1xf32>
    %32 = arith.subf %28, %31 : vector<32x1xf32>
    %33 = math.exp %32 : vector<32x1xf32>
    %34 = vector.broadcast %31 : vector<32x1xf32> to vector<32x128xf32>
    %35 = arith.subf %26, %34 : vector<32x128xf32>
    %36 = math.exp %35 : vector<32x128xf32>
    %37 = arith.mulf %10, %36 : vector<32x128xf32>
    %c0_18 = arith.constant 0 : index
    %c0_19 = arith.constant 0 : index
    %c0_20 = arith.constant 0 : index
    %38 = vector.load %arg9[%c0_18, %c0_19, %c0_20] : memref<1x32x1xf32, #tpu.memory_space<vmem>>, vector<1x32x1xf32>
    %39 = vector.shape_cast %38 : vector<1x32x1xf32> to vector<32x1xf32>
    %40 = arith.mulf %33, %39 : vector<32x1xf32>
    %cst_21 = arith.constant dense<0.000000e+00> : vector<32xf32>
    %41 = vector.multi_reduction <add>, %36, %cst_21 [1] : vector<32x128xf32> to vector<32xf32>
    %42 = vector.shape_cast %41 : vector<32xf32> to vector<32x1xf32>
    %43 = arith.addf %40, %42 : vector<32x1xf32>
    %c0_22 = arith.constant 0 : index
    %c0_23 = arith.constant 0 : index
    %c0_24 = arith.constant 0 : index
    %44 = vector.load %arg9[%c0_22, %c0_23, %c0_24] : memref<1x32x1xf32, #tpu.memory_space<vmem>>, vector<1x32x1xf32>
    %45 = vector.shape_cast %44 : vector<1x32x1xf32> to vector<32x1xf32>
    %46 = vector.shape_cast %43 : vector<32x1xf32> to vector<1x32x1xf32>
    tpu.vector_store %arg9[%c0_22, %c0_23, %c0_24], %46 {strides = array<i32>} : memref<1x32x1xf32, #tpu.memory_space<vmem>>, vector<1x32x1xf32>,
    %c0_25 = arith.constant 0 : index
    %c0_26 = arith.constant 0 : index
    %c0_27 = arith.constant 0 : index
    %47 = vector.load %arg10[%c0_25, %c0_26, %c0_27] : memref<1x32x1xf32, #tpu.memory_space<vmem>>, vector<1x32x1xf32>
    %48 = vector.shape_cast %47 : vector<1x32x1xf32> to vector<32x1xf32>
    %49 = arith.mulf %33, %48 : vector<32x1xf32>
    %cst_28 = arith.constant dense<0.000000e+00> : vector<32xf32>
    %50 = vector.multi_reduction <add>, %37, %cst_28 [1] : vector<32x128xf32> to vector<32xf32>
    %51 = vector.shape_cast %50 : vector<32xf32> to vector<32x1xf32>
    %52 = arith.addf %49, %51 : vector<32x1xf32>
    %c0_29 = arith.constant 0 : index
    %c0_30 = arith.constant 0 : index
    %c0_31 = arith.constant 0 : index
    %53 = vector.load %arg10[%c0_29, %c0_30, %c0_31] : memref<1x32x1xf32, #tpu.memory_space<vmem>>, vector<1x32x1xf32>
    %54 = vector.shape_cast %53 : vector<1x32x1xf32> to vector<32x1xf32>
    %55 = vector.shape_cast %52 : vector<32x1xf32> to vector<1x32x1xf32>
    tpu.vector_store %arg10[%c0_29, %c0_30, %c0_31], %55 {strides = array<i32>} : memref<1x32x1xf32, #tpu.memory_space<vmem>>, vector<1x32x1xf32>,
    %c0_32 = arith.constant 0 : index
    %c0_33 = arith.constant 0 : index
    %c0_34 = arith.constant 0 : index
    %56 = vector.load %arg11[%c0_32, %c0_33, %c0_34] : memref<1x32x1xf32, #tpu.memory_space<vmem>>, vector<1x32x1xf32>
    %57 = vector.shape_cast %56 : vector<1x32x1xf32> to vector<32x1xf32>
    %58 = arith.mulf %33, %57 : vector<32x1xf32>
    %59 = arith.mulf %10, %37 : vector<32x128xf32>
    %cst_35 = arith.constant dense<0.000000e+00> : vector<32xf32>
    %60 = vector.multi_reduction <add>, %59, %cst_35 [1] : vector<32x128xf32> to vector<32xf32>
    %61 = vector.shape_cast %60 : vector<32xf32> to vector<32x1xf32>
    %62 = arith.addf %58, %61 : vector<32x1xf32>
    %c0_36 = arith.constant 0 : index
    %c0_37 = arith.constant 0 : index
    %c0_38 = arith.constant 0 : index
    %63 = vector.load %arg11[%c0_36, %c0_37, %c0_38] : memref<1x32x1xf32, #tpu.memory_space<vmem>>, vector<1x32x1xf32>
    %64 = vector.shape_cast %63 : vector<1x32x1xf32> to vector<32x1xf32>
    %65 = vector.shape_cast %62 : vector<32x1xf32> to vector<1x32x1xf32>
    tpu.vector_store %arg11[%c0_36, %c0_37, %c0_38], %65 {strides = array<i32>} : memref<1x32x1xf32, #tpu.memory_space<vmem>>, vector<1x32x1xf32>,
    %c0_39 = arith.constant 0 : index
    %c0_40 = arith.constant 0 : index
    %c0_41 = arith.constant 0 : index
    %66 = vector.load %arg8[%c0_39, %c0_40, %c0_41] : memref<1x32x1xf32, #tpu.memory_space<vmem>>, vector<1x32x1xf32>
    %67 = vector.shape_cast %66 : vector<1x32x1xf32> to vector<32x1xf32>
    %68 = vector.shape_cast %31 : vector<32x1xf32> to vector<1x32x1xf32>
    tpu.vector_store %arg8[%c0_39, %c0_40, %c0_41], %68 {strides = array<i32>} : memref<1x32x1xf32, #tpu.memory_space<vmem>>, vector<1x32x1xf32>,
    %c0_i32_42 = arith.constant 0 : i32
    %69 = arith.cmpi eq, %arg1, %c0_i32_42 : i32
    %70 = arith.extui %69 : i1 to i32
    %c0_i32_43 = arith.constant 0 : i32
    %71 = arith.cmpi ne, %70, %c0_i32_43 : i32
    scf.if %71 {
      %c0_44 = arith.constant 0 : index
      %c0_45 = arith.constant 0 : index
      %c0_46 = arith.constant 0 : index
      %72 = vector.load %arg9[%c0_44, %c0_45, %c0_46] : memref<1x32x1xf32, #tpu.memory_space<vmem>>, vector<1x32x1xf32>
      %cst_47 = arith.constant 1.000000e+00 : f32
      %73 = vector.broadcast %cst_47 : f32 to vector<1x32x1xf32>
      %74 = arith.divf %73, %72 : vector<1x32x1xf32>
      %c0_48 = arith.constant 0 : index
      %c0_49 = arith.constant 0 : index
      %c0_50 = arith.constant 0 : index
      %75 = vector.load %arg10[%c0_48, %c0_49, %c0_50] : memref<1x32x1xf32, #tpu.memory_space<vmem>>, vector<1x32x1xf32>
      %76 = arith.mulf %75, %74 : vector<1x32x1xf32>
      %c0_51 = arith.constant 0 : index
      %c0_52 = arith.constant 0 : index
      %c0_53 = arith.constant 0 : index
      %77 = vector.load %arg11[%c0_51, %c0_52, %c0_53] : memref<1x32x1xf32, #tpu.memory_space<vmem>>, vector<1x32x1xf32>
      %78 = arith.mulf %77, %74 : vector<1x32x1xf32>
      %79 = arith.mulf %76, %76 : vector<1x32x1xf32>
      %80 = arith.subf %78, %79 : vector<1x32x1xf32>
      %cst_54 = arith.constant 9.99999974E-6 : f32
      %81 = vector.broadcast %cst_54 : f32 to vector<1x32x1xf32>
      %82 = arith.maximumf %80, %81 : vector<1x32x1xf32>
      %83 = math.sqrt %82 : vector<1x32x1xf32>
      %c0_55 = arith.constant 0 : index
      %c0_56 = arith.constant 0 : index
      %c0_57 = arith.constant 0 : index
      %84 = vector.load %arg7[%c0_55, %c0_56, %c0_57] : memref<1x64x1xf32, #tpu.memory_space<vmem>>, vector<1x32x1xf32>
      tpu.vector_store %arg7[%c0_55, %c0_56, %c0_57], %76 {strides = array<i32>} : memref<1x64x1xf32, #tpu.memory_space<vmem>>, vector<1x32x1xf32>,
      %c0_58 = arith.constant 0 : index
      %c32 = arith.constant 32 : index
      %c0_59 = arith.constant 0 : index
      %85 = vector.load %arg7[%c0_58, %c32, %c0_59] : memref<1x64x1xf32, #tpu.memory_space<vmem>>, vector<1x32x1xf32>
      tpu.vector_store %arg7[%c0_58, %c32, %c0_59], %83 {strides = array<i32>} : memref<1x64x1xf32, #tpu.memory_space<vmem>>, vector<1x32x1xf32>,
    } else {
    }
    return
  }
  func.func @transform_0(%arg0: i32, %arg1: i32) -> (i32, i32, i32) {
    %c0_i32 = arith.constant 0 : i32
    %c0_i32_0 = arith.constant 0 : i32
    return %arg0, %c0_i32, %arg1 : i32, i32, i32
  }
  func.func @transform_1(%arg0: i32, %arg1: i32) -> (i32, i32) {
    %c0_i32 = arith.constant 0 : i32
    %c0_i32_0 = arith.constant 0 : i32
    %c0_i32_1 = arith.constant 0 : i32
    return %c0_i32, %c0_i32_0 : i32, i32
  }
  func.func @transform_2(%arg0: i32, %arg1: i32) -> (i32, i32) {
    %c0_i32 = arith.constant 0 : i32
    %c0_i32_0 = arith.constant 0 : i32
    %c0_i32_1 = arith.constant 0 : i32
    return %c0_i32, %c0_i32_0 : i32, i32
  }
  func.func @transform_3(%arg0: i32, %arg1: i32) -> (i32, i32) {
    %c0_i32 = arith.constant 0 : i32
    %c0_i32_0 = arith.constant 0 : i32
    %c0_i32_1 = arith.constant 0 : i32
    return %c0_i32, %c0_i32_0 : i32, i32
  }
  func.func @transform_4(%arg0: i32, %arg1: i32) -> (i32, i32) {
    %c0_i32 = arith.constant 0 : i32
    %c0_i32_0 = arith.constant 0 : i32
    %c0_i32_1 = arith.constant 0 : i32
    return %c0_i32, %c0_i32_0 : i32, i32
  }
  func.func @transform_5(%arg0: i32, %arg1: i32) -> (i32, i32, i32) {
    %c0_i32 = arith.constant 0 : i32
    %c0_i32_0 = arith.constant 0 : i32
    %c0_i32_1 = arith.constant 0 : i32
    return %arg0, %c0_i32, %c0_i32_0 : i32, i32, i32
  }
}

</mosaic_0001>

<llo_original>
// kernel: tpu_custom_call.1
$region0: #{tpu_custom_call.1}
  #allocation0 [shape = 'u32[]', space=smem, size = 0x4, offset = 0x4, fixed_abs, tag = 'smem constant byte address 0x4 - core index']
  #allocation1 [shape = 'u32[144,128]{1,0:T(1,128)}', space=vmem, size = 0x12000, scoped, tag = 'internal scratch']
  #allocation2 [shape = 'f32[1,32,1]{2,1,0:T(8,128)}', space=vmem, size = 0x4000, scoped, tag = 'scratch operand']
  #allocation3 [shape = 'f32[1,32,1]{2,1,0:T(8,128)}', space=vmem, size = 0x4000, scoped, tag = 'scratch operand']
  #allocation4 [shape = 'f32[1,32,1]{2,1,0:T(8,128)}', space=vmem, size = 0x4000, scoped, tag = 'scratch operand']
  #allocation5 [shape = 'f32[1,32,1]{2,1,0:T(8,128)}', space=vmem, size = 0x4000, scoped, tag = 'scratch operand']
  %s0 = inlined_call_operand.vmem [shape: f32[2,32,128], index: 0, kind: input, shape index: {}]
  %s1 = inlined_call_operand.vmem [shape: f32[128,32], index: 1, kind: input, shape index: {}]
  %s2 = inlined_call_operand.vmem [shape: f32[128,1], index: 2, kind: input, shape index: {}]
  %s3 = inlined_call_operand.vmem [shape: f32[32,128], index: 3, kind: input, shape index: {}]
  %s4 = inlined_call_operand.vmem [shape: f32[32,1], index: 4, kind: input, shape index: {}]
  %s5 = inlined_call_operand.vmem [shape: f32[2,64,1], index: 5, kind: output, shape index: {}]
  %s6 = sld [smem:[#allocation0]]
  $region61: #{tpu_custom_call.1} parent=0
    _
  %s8 = ssub.s32 1, %s6
  %s9 = scalar_select 0, %s8, %s6
  loop: start=0, step=1, limit=4
  $region2: #{tpu_custom_call.1} parent=0 // loop_pre_header
    _
  $region3: #{tpu_custom_call.1} parent=0 // loop_header
    %s11 = sphi 0, %s15
    %p12 = scmp.ge.s32.totalorder %s11, 4
    %s18 = sphi 0, %s30
    %s19 = sphi 0, %s26
    %s20 = sphi 0, %s18
    %s21 = sphi 0, %s19
    %s22 = sphi 0, %s20
    %s23 = sphi 0, %s21
    %s35 = sphi 0, %s37
    %s38 = sphi 0, %s35
    %s39 = sphi 0, %s38
    %s55 = sphi 0, %s39
    %s59 = sphi 0, %s59
    %s61 = sphi 0, %s59
    %s62 = sphi 0, %s61
    %s76 = sphi 0, %s62
    %s80 = sphi 0, %s80
    %s82 = sphi 0, %s80
    %s83 = sphi 0, %s82
    %s97 = sphi 0, %s83
    %s101 = sphi 0, %s101
    %s103 = sphi 0, %s101
    %s104 = sphi 0, %s103
    %s118 = sphi 0, %s104
    %s122 = sphi 0, %s122
    %s124 = sphi 0, %s122
    %s125 = sphi 0, %s124
    %s139 = sphi 0, %s125
    %s145 = sphi 0, %s147
    %s148 = sphi 0, %s145
    %s149 = sphi 0, %s148
    %s165 = sphi 0, %s149
  $region4: #{tpu_custom_call.1} parent=0 // loop_header_branch
    %14 = sbr.rel (%p12) target = $region8
  $region5: #{tpu_custom_call.1} parent=0 // loop_body
    %s16 = ssub.s32 %s11, 1
    %s17 = ssub.s32 %s11, 2
    %s24 = sadd.s32 1, %s19
    %p25 = scmp.ge.s32.totalorder %s24, 1
    %s26 = scalar_select %p25, 0, %s24
    %s27 = sadd.s32 1, %s18
    %s28 = scalar_select %p25, %s27, %s18
    %p29 = scmp.ge.s32.totalorder %s28, 2
    %s30 = scalar_select %p29, 0, %s28
    %s31 = ssub.s32 %s18, %s30
    %s32 = ssub.s32 %s19, %s26
    %s33 = sor.u32 %s31, %s32
    %p34 = scmp.eq.s32.totalorder %s33, 0
    %s36 = sadd.s32 %s35, 1
    %s37 = scalar_select %p34, %s35, %s36
    %p40 = pneg %p34
    %p41 = scmp.eq.s32.totalorder %s11, 1
    %p42 = por %p40, %p41
    %p43 = scmp.ne.s32.totalorder %s35, %s38
    %p44 = scmp.eq.s32.totalorder %s11, 0
    %p45 = por %p43, %p44
    %p46 = scmp.ne.s32.totalorder %s35, %s38
    %p47 = scmp.eq.s32.totalorder %s16, 1
    %p48 = por %p46, %p47
    %p49 = scmp.ne.s32.totalorder %s38, %s39
    %p50 = scmp.eq.s32.totalorder %s16, 0
    %p51 = por %p49, %p50
    %p52 = scmp.ne.s32.totalorder %s38, %s39
    %p53 = scmp.eq.s32.totalorder %s17, 1
    %p54 = por %p52, %p53
    %p56 = scmp.ne.s32.totalorder %s39, %s55
    %p57 = scmp.eq.s32.totalorder %s17, 0
    %p58 = por %p56, %p57
    %s60 = sadd.s32 %s59, 1
    %p63 = scmp.eq.s32.totalorder %s11, 1
    %p64 = scmp.ne.s32.totalorder %s59, %s61
    %p65 = scmp.eq.s32.totalorder %s11, 0
    %p66 = por %p64, %p65
    %p67 = scmp.ne.s32.totalorder %s59, %s61
    %p68 = scmp.eq.s32.totalorder %s16, 1
    %p69 = por %p67, %p68
    %p70 = scmp.ne.s32.totalorder %s61, %s62
    %p71 = scmp.eq.s32.totalorder %s16, 0
    %p72 = por %p70, %p71
    %p73 = scmp.ne.s32.totalorder %s61, %s62
    %p74 = scmp.eq.s32.totalorder %s17, 1
    %p75 = por %p73, %p74
    %p77 = scmp.ne.s32.totalorder %s62, %s76
    %p78 = scmp.eq.s32.totalorder %s17, 0
    %p79 = por %p77, %p78
    %s81 = sadd.s32 %s80, 1
    %p84 = scmp.eq.s32.totalorder %s11, 1
    %p85 = scmp.ne.s32.totalorder %s80, %s82
    %p86 = scmp.eq.s32.totalorder %s11, 0
    %p87 = por %p85, %p86
    %p88 = scmp.ne.s32.totalorder %s80, %s82
    %p89 = scmp.eq.s32.totalorder %s16, 1
    %p90 = por %p88, %p89
    %p91 = scmp.ne.s32.totalorder %s82, %s83
    %p92 = scmp.eq.s32.totalorder %s16, 0
    %p93 = por %p91, %p92
    %p94 = scmp.ne.s32.totalorder %s82, %s83
    %p95 = scmp.eq.s32.totalorder %s17, 1
    %p96 = por %p94, %p95
    %p98 = scmp.ne.s32.totalorder %s83, %s97
    %p99 = scmp.eq.s32.totalorder %s17, 0
    %p100 = por %p98, %p99
    %s102 = sadd.s32 %s101, 1
    %p105 = scmp.eq.s32.totalorder %s11, 1
    %p106 = scmp.ne.s32.totalorder %s101, %s103
    %p107 = scmp.eq.s32.totalorder %s11, 0
    %p108 = por %p106, %p107
    %p109 = scmp.ne.s32.totalorder %s101, %s103
    %p110 = scmp.eq.s32.totalorder %s16, 1
    %p111 = por %p109, %p110
    %p112 = scmp.ne.s32.totalorder %s103, %s104
    %p113 = scmp.eq.s32.totalorder %s16, 0
    %p114 = por %p112, %p113
    %p115 = scmp.ne.s32.totalorder %s103, %s104
    %p116 = scmp.eq.s32.totalorder %s17, 1
    %p117 = por %p115, %p116
    %p119 = scmp.ne.s32.totalorder %s104, %s118
    %p120 = scmp.eq.s32.totalorder %s17, 0
    %p121 = por %p119, %p120
    %s123 = sadd.s32 %s122, 1
    %p126 = scmp.eq.s32.totalorder %s11, 1
    %p127 = scmp.ne.s32.totalorder %s122, %s124
    %p128 = scmp.eq.s32.totalorder %s11, 0
    %p129 = por %p127, %p128
    %p130 = scmp.ne.s32.totalorder %s122, %s124
    %p131 = scmp.eq.s32.totalorder %s16, 1
    %p132 = por %p130, %p131
    %p133 = scmp.ne.s32.totalorder %s124, %s125
    %p134 = scmp.eq.s32.totalorder %s16, 0
    %p135 = por %p133, %p134
    %p136 = scmp.ne.s32.totalorder %s124, %s125
    %p137 = scmp.eq.s32.totalorder %s17, 1
    %p138 = por %p136, %p137
    %p140 = scmp.ne.s32.totalorder %s125, %s139
    %p141 = scmp.eq.s32.totalorder %s17, 0
    %p142 = por %p140, %p141
    %s143 = ssub.s32 %s18, %s30
    %p144 = scmp.eq.s32.totalorder %s143, 0
    %s146 = sadd.s32 %s145, 1
    %s147 = scalar_select %p144, %s145, %s146
    %p150 = pneg %p144
    %p151 = scmp.eq.s32.totalorder %s11, 1
    %p152 = por %p150, %p151
    %p153 = scmp.ne.s32.totalorder %s145, %s148
    %p154 = scmp.eq.s32.totalorder %s11, 0
    %p155 = por %p153, %p154
    %p156 = scmp.ne.s32.totalorder %s145, %s148
    %p157 = scmp.eq.s32.totalorder %s16, 1
    %p158 = por %p156, %p157
    %p159 = scmp.ne.s32.totalorder %s148, %s149
    %p160 = scmp.eq.s32.totalorder %s16, 0
    %p161 = por %p159, %p160
    %p162 = scmp.ne.s32.totalorder %s148, %s149
    %p163 = scmp.eq.s32.totalorder %s17, 1
    %p164 = por %p162, %p163
    %p166 = scmp.ne.s32.totalorder %s149, %s165
    %p167 = scmp.eq.s32.totalorder %s17, 0
    %p168 = por %p166, %p167
    %p169 = scmp.le.s32.totalorder 1, %s11
    %p170 = scmp.lt.s32.totalorder %s11, 3
    %p171 = pnand %p169, %p170
    %p172 = pneg %p171
    // Predicated region
    $region9: #{tpu_custom_call.1} parent=5 // pred_check
      _
    $region10: #{tpu_custom_call.1} parent=5 // pred_check_branch
      %174 = sbr.rel (%p171) target = $region12
    $region11: #{tpu_custom_call.1} parent=5 // pred_region
      %s175 = ssub.s32 %s11, 1
      // Predicated region
      $region13: #{tpu_custom_call.1} parent=11 // pred_check
        %p176 = pneg %p72
      $region14: #{tpu_custom_call.1} parent=11 // pred_check_branch
        %178 = sbr.rel (%p176) target = $region16
      $region15: #{tpu_custom_call.1} parent=11 // pred_region
        _
      $region16: #{tpu_custom_call.1} parent=11 // pred_fallthru
        _
      // Predicated region
      $region17: #{tpu_custom_call.1} parent=11 // pred_check
        %p179 = pneg %p93
      $region18: #{tpu_custom_call.1} parent=11 // pred_check_branch
        %181 = sbr.rel (%p179) target = $region20
      $region19: #{tpu_custom_call.1} parent=11 // pred_region
        _
      $region20: #{tpu_custom_call.1} parent=11 // pred_fallthru
        _
      // Predicated region
      $region21: #{tpu_custom_call.1} parent=11 // pred_check
        %p182 = pneg %p114
      $region22: #{tpu_custom_call.1} parent=11 // pred_check_branch
        %184 = sbr.rel (%p182) target = $region24
      $region23: #{tpu_custom_call.1} parent=11 // pred_region
        _
      $region24: #{tpu_custom_call.1} parent=11 // pred_fallthru
        _
      // Predicated region
      $region25: #{tpu_custom_call.1} parent=11 // pred_check
        %p185 = pneg %p135
      $region26: #{tpu_custom_call.1} parent=11 // pred_check_branch
        %187 = sbr.rel (%p185) target = $region28
      $region27: #{tpu_custom_call.1} parent=11 // pred_region
        _
      $region28: #{tpu_custom_call.1} parent=11 // pred_fallthru
        _
    $region12: #{tpu_custom_call.1} parent=5 // pred_fallthru
      _
    %p188 = scmp.lt.s32.totalorder %s11, 2
    // Predicated region
    $region29: #{tpu_custom_call.1} parent=5 // pred_check
      %p189 = pneg %p188
    $region30: #{tpu_custom_call.1} parent=5 // pred_check_branch
      %191 = sbr.rel (%p189) target = $region32
    $region31: #{tpu_custom_call.1} parent=5 // pred_region
      // Predicated region
      $region33: #{tpu_custom_call.1} parent=31 // pred_check
        %p192 = pneg %p45
      $region34: #{tpu_custom_call.1} parent=31 // pred_check_branch
        %194 = sbr.rel (%p192) target = $region36
      $region35: #{tpu_custom_call.1} parent=31 // pred_region
        %p195 = scmp.lt.s32.totalorder %s18, 1
        %s196 = scalar_select %p195, %s18, 1
        %p197 = scmp.lt.s32.totalorder %s19, 0
        %s198 = scalar_select %p197, %s19, 0
        %s199 = smul.addr %s196, 4
        %s200 = sadd.s32 %s198, %s199
        %s201 = smul.addr %s200, 8
        %s202 = scalar_lea.vmem %s0, %s201
      $region36: #{tpu_custom_call.1} parent=31 // pred_fallthru
        _
    $region32: #{tpu_custom_call.1} parent=5 // pred_fallthru
      _
    %p203 = scmp.le.s32.totalorder 1, %s11
    %p204 = scmp.lt.s32.totalorder %s11, 3
    %p205 = pnand %p203, %p204
    %p206 = pneg %p205
    // Predicated region
    $region37: #{tpu_custom_call.1} parent=5 // pred_check
      _
    $region38: #{tpu_custom_call.1} parent=5 // pred_check_branch
      %208 = sbr.rel (%p205) target = $region40
    $region39: #{tpu_custom_call.1} parent=5 // pred_region
      %s209 = ssub.s32 %s11, 1
      %p210 = scmp.lt.s32.totalorder %s20, 1
      %s211 = scalar_select %p210, %s20, 1
      %p212 = scmp.lt.s32.totalorder %s21, 0
      %s213 = scalar_select %p212, %s21, 0
      %s214 = smul.addr %s211, 4
      %s215 = sadd.s32 %s213, %s214
      %s216 = smul.addr %s215, 8
      %s217 = scalar_lea.vmem %s0, %s216
      %p218 = pneg %p51
      %p219 = pneg %p48
      %p220 = pneg %p72
      %p221 = pneg %p69
      %p222 = pneg %p93
      %p223 = pneg %p90
      %p224 = pneg %p114
      %p225 = pneg %p111
      %p226 = pneg %p135
      %p227 = pneg %p132
      %p228 = pneg %p161
      %p229 = pneg %p158
      %p230 = scmp.lt.s32.totalorder %s20, 1
      %s231 = scalar_select %p230, %s20, 1
      %s232 = smul.addr %s231, 8
      %s233 = smul.addr %s232, 8
      %s234 = scalar_lea.vmem %s5, %s233
      %p235 = scmp.lt.s32.totalorder %s20, 1
      %s236 = scalar_select %p235, %s20, 1
      %p237 = scmp.lt.s32.totalorder %s21, 0
      %s238 = scalar_select %p237, %s21, 0
      %s239 = smul.addr %s236, 4
      %s240 = sadd.s32 %s238, %s239
      %s241 = smul.addr %s240, 8
      %s242 = scalar_lea.vmem %s0, %s241
      %p243 = scmp.lt.s32.totalorder %s20, 1
      %s244 = scalar_select %p243, %s20, 1
      %s245 = smul.addr %s244, 8
      %s246 = smul.addr %s245, 8
      %s247 = scalar_lea.vmem %s5, %s246
      %p248 = scmp.eq.s32.totalorder %s21, 0
      // Predicated region
      $region41: #{tpu_custom_call.1} parent=39 // pred_check
        %p249 = pneg %p248
      $region42: #{tpu_custom_call.1} parent=39 // pred_check_branch
        %251 = sbr.rel (%p249) target = $region44
      $region43: #{tpu_custom_call.1} parent=39 // pred_region
        %vm252 = vcmask 7168
        %253 = vst.msk [vmem:[#allocation2] sm:$0xff] %vm252, -inf
        %254 = vst.msk [vmem:[#allocation2 + $0x8] sm:$0xff] %vm252, -inf
        %255 = vst.msk [vmem:[#allocation2 + $0x10] sm:$0xff] %vm252, -inf
        %256 = vst.msk [vmem:[#allocation2 + $0x18] sm:$0xff] %vm252, -inf
        %257 = vst.msk [vmem:[#allocation3] sm:$0xff] %vm252, 0.0
        %258 = vst.msk [vmem:[#allocation3 + $0x8] sm:$0xff] %vm252, 0.0
        %259 = vst.msk [vmem:[#allocation3 + $0x10] sm:$0xff] %vm252, 0.0
        %260 = vst.msk [vmem:[#allocation3 + $0x18] sm:$0xff] %vm252, 0.0
        %261 = vst.msk [vmem:[#allocation4] sm:$0xff] %vm252, 0.0
        %262 = vst.msk [vmem:[#allocation4 + $0x8] sm:$0xff] %vm252, 0.0
        %263 = vst.msk [vmem:[#allocation4 + $0x10] sm:$0xff] %vm252, 0.0
        %264 = vst.msk [vmem:[#allocation4 + $0x18] sm:$0xff] %vm252, 0.0
        %265 = vst.msk [vmem:[#allocation5] sm:$0xff] %vm252, 0.0
        %266 = vst.msk [vmem:[#allocation5 + $0x8] sm:$0xff] %vm252, 0.0
        %267 = vst.msk [vmem:[#allocation5 + $0x10] sm:$0xff] %vm252, 0.0
        %268 = vst.msk [vmem:[#allocation5 + $0x18] sm:$0xff] %vm252, 0.0
      $region44: #{tpu_custom_call.1} parent=39 // pred_fallthru
        _
      %s269 = smul.u32 %s21, 128
      %v270 = vlaneseq
      %v271 = vand.u32 %v270, 127
      %v272 = vstv %s269
      %v273 = vadd.s32 %v272, %v271
      %vm274 = vcmp.lt.s32.totalorder %v273, 16
      %v275 = vld [vmem:[%s242] sm:$0xff]
      %v276 = vld [vmem:[%s242 + $0x8] sm:$0xff]
      %v277 = vld [vmem:[%s242 + $0x10] sm:$0xff]
      %v278 = vld [vmem:[%s242 + $0x18] sm:$0xff]
      %v279 = vld [vmem:[%s1] sm:$0xff]
      %v280 = vld [vmem:[%s1 + $0x8] sm:$0xff]
      %v281 = vld [vmem:[%s1 + $0x10] sm:$0xff]
      %v282 = vld [vmem:[%s1 + $0x18] sm:$0xff]
      %v283 = vld [vmem:[%s1 + $0x20] sm:$0xff]
      %v284 = vld [vmem:[%s1 + $0x28] sm:$0xff]
      %v285 = vld [vmem:[%s1 + $0x30] sm:$0xff]
      %v286 = vld [vmem:[%s1 + $0x38] sm:$0xff]
      %v287 = vld [vmem:[%s1 + $0x40] sm:$0xff]
      %v288 = vld [vmem:[%s1 + $0x48] sm:$0xff]
      %v289 = vld [vmem:[%s1 + $0x50] sm:$0xff]
      %v290 = vld [vmem:[%s1 + $0x58] sm:$0xff]
      %v291 = vld [vmem:[%s1 + $0x60] sm:$0xff]
      %v292 = vld [vmem:[%s1 + $0x68] sm:$0xff]
      %v293 = vld [vmem:[%s1 + $0x70] sm:$0xff]
      %v294 = vld [vmem:[%s1 + $0x78] sm:$0xff]
      %v295 = vld [vmem:[%s2] sm:$0xff]
      %v296 = vld [vmem:[%s2 + $0x8] sm:$0xff]
      %v297 = vld [vmem:[%s2 + $0x10] sm:$0xff]
      %v298 = vld [vmem:[%s2 + $0x18] sm:$0xff]
      %v299 = vld [vmem:[%s2 + $0x20] sm:$0xff]
      %v300 = vld [vmem:[%s2 + $0x28] sm:$0xff]
      %v301 = vld [vmem:[%s2 + $0x30] sm:$0xff]
      %v302 = vld [vmem:[%s2 + $0x38] sm:$0xff]
      %v303 = vld [vmem:[%s2 + $0x40] sm:$0xff]
      %v304 = vld [vmem:[%s2 + $0x48] sm:$0xff]
      %v305 = vld [vmem:[%s2 + $0x50] sm:$0xff]
      %v306 = vld [vmem:[%s2 + $0x58] sm:$0xff]
      %v307 = vld [vmem:[%s2 + $0x60] sm:$0xff]
      %v308 = vld [vmem:[%s2 + $0x68] sm:$0xff]
      %v309 = vld [vmem:[%s2 + $0x70] sm:$0xff]
      %v310 = vld [vmem:[%s2 + $0x78] sm:$0xff]
      %312 = vset.pattern.permute.xlu0 0
      %313 = vperm.xlu0 %312, %v295
      %v314 = vpop.permute.xlu0 %313
      %317 = vset.pattern.permute.xlu0 0
      %318 = vperm.xlu0 %317, %v296
      %v319 = vpop.permute.xlu0 %318
      %322 = vset.pattern.permute.xlu0 0
      %323 = vperm.xlu0 %322, %v297
      %v324 = vpop.permute.xlu0 %323
      %327 = vset.pattern.permute.xlu0 0
      %328 = vperm.xlu0 %327, %v298
      %v329 = vpop.permute.xlu0 %328
      %332 = vset.pattern.permute.xlu0 0
      %333 = vperm.xlu0 %332, %v299
      %v334 = vpop.permute.xlu0 %333
      %337 = vset.pattern.permute.xlu0 0
      %338 = vperm.xlu0 %337, %v300
      %v339 = vpop.permute.xlu0 %338
      %342 = vset.pattern.permute.xlu0 0
      %343 = vperm.xlu0 %342, %v301
      %v344 = vpop.permute.xlu0 %343
      %347 = vset.pattern.permute.xlu0 0
      %348 = vperm.xlu0 %347, %v302
      %v349 = vpop.permute.xlu0 %348
      %352 = vset.pattern.permute.xlu0 0
      %353 = vperm.xlu0 %352, %v303
      %v354 = vpop.permute.xlu0 %353
      %357 = vset.pattern.permute.xlu0 0
      %358 = vperm.xlu0 %357, %v304
      %v359 = vpop.permute.xlu0 %358
      %362 = vset.pattern.permute.xlu0 0
      %363 = vperm.xlu0 %362, %v305
      %v364 = vpop.permute.xlu0 %363
      %367 = vset.pattern.permute.xlu0 0
      %368 = vperm.xlu0 %367, %v306
      %v369 = vpop.permute.xlu0 %368
      %372 = vset.pattern.permute.xlu0 0
      %373 = vperm.xlu0 %372, %v307
      %v374 = vpop.permute.xlu0 %373
      %377 = vset.pattern.permute.xlu0 0
      %378 = vperm.xlu0 %377, %v308
      %v379 = vpop.permute.xlu0 %378
      %382 = vset.pattern.permute.xlu0 0
      %383 = vperm.xlu0 %382, %v309
      %v384 = vpop.permute.xlu0 %383
      %387 = vset.pattern.permute.xlu0 0
      %388 = vperm.xlu0 %387, %v310
      %v389 = vpop.permute.xlu0 %388
      %vm391 = vcmask 261120
      %v393 = vsel %vm391, %v279, 0
      %v396 = vsel %vm391, %v280, 0
      %v399 = vsel %vm391, %v281, 0
      %v402 = vsel %vm391, %v282, 0
      %v405 = vsel %vm391, %v283, 0
      %v408 = vsel %vm391, %v284, 0
      %v411 = vsel %vm391, %v285, 0
      %v414 = vsel %vm391, %v286, 0
      %v417 = vsel %vm391, %v287, 0
      %v420 = vsel %vm391, %v288, 0
      %v423 = vsel %vm391, %v289, 0
      %v426 = vsel %vm391, %v290, 0
      %v429 = vsel %vm391, %v291, 0
      %v432 = vsel %vm391, %v292, 0
      %v435 = vsel %vm391, %v293, 0
      %v438 = vsel %vm391, %v294, 0
      %440 = vmatprep.subr.mxu0 0.0
      %441 = vmatpush1.msra.mxu0 %v275
      %442 = vmatprep.subr.mxu0 0.0
      %443 = vmatpush1.msra.mxu0 %v276
      %444 = vmatprep.subr.mxu0 0.0
      %445 = vmatpush1.msra.mxu0 %v277
      %446 = vmatprep.subr.mxu0 0.0
      %447 = vmatpush1.msra.mxu0 %v278
      %448 = vmatprep.subr.mxu0 0.0
      %449 = vmatpush1.msra.mxu0 0.0
      %450 = vmatprep.subr.mxu0 0.0
      %451 = vmatpush1.msra.mxu0 0.0
      %452 = vmatprep.subr.mxu0 0.0
      %453 = vmatpush1.msra.mxu0 0.0
      %454 = vmatprep.subr.mxu0 0.0
      %455 = vmatpush1.msra.mxu0 0.0
      %456 = vmatprep.subr.mxu0 0.0
      %457 = vmatpush1.msra.mxu0 0.0
      %458 = vmatprep.subr.mxu0 0.0
      %459 = vmatpush1.msra.mxu0 0.0
      %460 = vmatprep.subr.mxu0 0.0
      %461 = vmatpush1.msra.mxu0 0.0
      %462 = vmatprep.subr.mxu0 0.0
      %463 = vmatpush1.msra.mxu0 0.0
      %464 = vmatprep.subr.mxu0 0.0
      %465 = vmatpush1.msra.mxu0 0.0
      %466 = vmatprep.subr.mxu0 0.0
      %467 = vmatpush1.msra.mxu0 0.0
      %468 = vmatprep.subr.mxu0 0.0
      %469 = vmatpush1.msra.mxu0 0.0
      %470 = vmatprep.subr.mxu0 0.0
      %471 = vmatpush1.msra.mxu0 0.0
      %472 = vmatprep.subr.mxu0 0.0
      %473 = vmatpush1.msra.mxu0 0.0
      %474 = vmatprep.subr.mxu0 0.0
      %475 = vmatpush1.msra.mxu0 0.0
      %476 = vmatprep.subr.mxu0 0.0
      %477 = vmatpush1.msra.mxu0 0.0
      %478 = vmatprep.subr.mxu0 0.0
      %479 = vmatpush1.msra.mxu0 0.0
      %480 = vmatprep.subr.mxu0 0.0
      %481 = vmatpush1.msra.mxu0 0.0
      %482 = vmatprep.subr.mxu0 0.0
      %483 = vmatpush1.msra.mxu0 0.0
      %484 = vmatprep.subr.mxu0 0.0
      %485 = vmatpush1.msra.mxu0 0.0
      %486 = vmatprep.subr.mxu0 0.0
      %487 = vmatpush1.msra.mxu0 0.0
      %488 = vmatprep.subr.mxu0 0.0
      %489 = vmatpush1.msra.mxu0 0.0
      %490 = vmatprep.subr.mxu0 0.0
      %491 = vmatpush1.msra.mxu0 0.0
      %492 = vmatprep.subr.mxu0 0.0
      %493 = vmatpush1.msra.mxu0 0.0
      %494 = vmatprep.subr.mxu0 0.0
      %495 = vmatpush1.msra.mxu0 0.0
      %496 = vmatprep.subr.mxu0 0.0
      %497 = vmatpush1.msra.mxu0 0.0
      %498 = vmatprep.subr.mxu0 0.0
      %499 = vmatpush1.msra.mxu0 0.0
      %500 = vmatprep.subr.mxu0 0.0
      %501 = vmatpush1.msra.mxu0 0.0
      %502 = vmatprep.subr.mxu0 0.0
      %503 = vmatpush1.msra.mxu0 0.0
      %504 = vmatprep.mubr.f32.mxu0 0.0
      %505 = vmatmul.mubr.f32.gmra.mrb[0].mxu0 %v393
      %v506 = vpop.f32.mrb[0].mxu0
      %v507 = vadd.f32 %v314, %v506
      %v508 = vpop.f32.mrb[0].mxu0
      %509 = vmatprep.mubr.f32.mxu0 0.0
      %510 = vmatmul.mubr.f32.gmra.mrb[0].mxu0 %v396
      %v511 = vpop.f32.mrb[0].mxu0
      %v512 = vadd.f32 %v319, %v511
      %v513 = vpop.f32.mrb[0].mxu0
      %514 = vmatprep.mubr.f32.mxu0 0.0
      %515 = vmatmul.mubr.f32.gmra.mrb[0].mxu0 %v399
      %v516 = vpop.f32.mrb[0].mxu0
      %v517 = vadd.f32 %v324, %v516
      %v518 = vpop.f32.mrb[0].mxu0
      %519 = vmatprep.mubr.f32.mxu0 0.0
      %520 = vmatmul.mubr.f32.gmra.mrb[0].mxu0 %v402
      %v521 = vpop.f32.mrb[0].mxu0
      %v522 = vadd.f32 %v329, %v521
      %v523 = vpop.f32.mrb[0].mxu0
      %524 = vmatprep.mubr.f32.mxu0 0.0
      %525 = vmatmul.mubr.f32.gmra.mrb[0].mxu0 %v405
      %v526 = vpop.f32.mrb[0].mxu0
      %v527 = vadd.f32 %v334, %v526
      %v528 = vpop.f32.mrb[0].mxu0
      %529 = vmatprep.mubr.f32.mxu0 0.0
      %530 = vmatmul.mubr.f32.gmra.mrb[0].mxu0 %v408
      %v531 = vpop.f32.mrb[0].mxu0
      %v532 = vadd.f32 %v339, %v531
      %v533 = vpop.f32.mrb[0].mxu0
      %534 = vmatprep.mubr.f32.mxu0 0.0
      %535 = vmatmul.mubr.f32.gmra.mrb[0].mxu0 %v411
      %v536 = vpop.f32.mrb[0].mxu0
      %v537 = vadd.f32 %v344, %v536
      %v538 = vpop.f32.mrb[0].mxu0
      %539 = vmatprep.mubr.f32.mxu0 0.0
      %540 = vmatmul.mubr.f32.gmra.mrb[0].mxu0 %v414
      %v541 = vpop.f32.mrb[0].mxu0
      %v542 = vadd.f32 %v349, %v541
      %v543 = vpop.f32.mrb[0].mxu0
      %544 = vmatprep.mubr.f32.mxu0 0.0
      %545 = vmatmul.mubr.f32.gmra.mrb[0].mxu0 %v417
      %v546 = vpop.f32.mrb[0].mxu0
      %v547 = vadd.f32 %v354, %v546
      %v548 = vpop.f32.mrb[0].mxu0
      %549 = vmatprep.mubr.f32.mxu0 0.0
      %550 = vmatmul.mubr.f32.gmra.mrb[0].mxu0 %v420
      %v551 = vpop.f32.mrb[0].mxu0
      %v552 = vadd.f32 %v359, %v551
      %v553 = vpop.f32.mrb[0].mxu0
      %554 = vmatprep.mubr.f32.mxu0 0.0
      %555 = vmatmul.mubr.f32.gmra.mrb[0].mxu0 %v423
      %v556 = vpop.f32.mrb[0].mxu0
      %v557 = vadd.f32 %v364, %v556
      %v558 = vpop.f32.mrb[0].mxu0
      %559 = vmatprep.mubr.f32.mxu0 0.0
      %560 = vmatmul.mubr.f32.gmra.mrb[0].mxu0 %v426
      %v561 = vpop.f32.mrb[0].mxu0
      %v562 = vadd.f32 %v369, %v561
      %v563 = vpop.f32.mrb[0].mxu0
      %564 = vmatprep.mubr.f32.mxu0 0.0
      %565 = vmatmul.mubr.f32.gmra.mrb[0].mxu0 %v429
      %v566 = vpop.f32.mrb[0].mxu0
      %v567 = vadd.f32 %v374, %v566
      %v568 = vpop.f32.mrb[0].mxu0
      %569 = vmatprep.mubr.f32.mxu0 0.0
      %570 = vmatmul.mubr.f32.gmra.mrb[0].mxu0 %v432
      %v571 = vpop.f32.mrb[0].mxu0
      %v572 = vadd.f32 %v379, %v571
      %v573 = vpop.f32.mrb[0].mxu0
      %574 = vmatprep.mubr.f32.mxu0 0.0
      %575 = vmatmul.mubr.f32.gmra.mrb[0].mxu0 %v435
      %v576 = vpop.f32.mrb[0].mxu0
      %v577 = vadd.f32 %v384, %v576
      %v578 = vpop.f32.mrb[0].mxu0
      %579 = vmatprep.mubr.f32.mxu0 0.0
      %580 = vmatmul.mubr.f32.gmra.mrb[0].mxu0 %v438
      %v581 = vpop.f32.mrb[0].mxu0
      %v582 = vadd.f32 %v389, %v581
      %v583 = vpop.f32.mrb[0].mxu0
      %584 = vdwg.mxu0
      %v585 = vmax.f32 %v507, 0.0
      %v586 = vmax.f32 %v512, 0.0
      %v587 = vmax.f32 %v517, 0.0
      %v588 = vmax.f32 %v522, 0.0
      %v589 = vmax.f32 %v527, 0.0
      %v590 = vmax.f32 %v532, 0.0
      %v591 = vmax.f32 %v537, 0.0
      %v592 = vmax.f32 %v542, 0.0
      %v593 = vmax.f32 %v547, 0.0
      %v594 = vmax.f32 %v552, 0.0
      %v595 = vmax.f32 %v557, 0.0
      %v596 = vmax.f32 %v562, 0.0
      %v597 = vmax.f32 %v567, 0.0
      %v598 = vmax.f32 %v572, 0.0
      %v599 = vmax.f32 %v577, 0.0
      %v600 = vmax.f32 %v582, 0.0
      %v601 = vld [vmem:[%s3] sm:$0xff]
      %v602 = vld [vmem:[%s3 + $0x8] sm:$0xff]
      %v603 = vld [vmem:[%s3 + $0x10] sm:$0xff]
      %v604 = vld [vmem:[%s3 + $0x18] sm:$0xff]
      %v605 = vld [vmem:[%s4] sm:$0xff]
      %v606 = vld [vmem:[%s4 + $0x8] sm:$0xff]
      %v607 = vld [vmem:[%s4 + $0x10] sm:$0xff]
      %v608 = vld [vmem:[%s4 + $0x18] sm:$0xff]
      %610 = vset.pattern.permute.xlu0 0
      %611 = vperm.xlu0 %610, %v605
      %v612 = vpop.permute.xlu0 %611
      %615 = vset.pattern.permute.xlu0 0
      %616 = vperm.xlu0 %615, %v606
      %v617 = vpop.permute.xlu0 %616
      %620 = vset.pattern.permute.xlu0 0
      %621 = vperm.xlu0 %620, %v607
      %v622 = vpop.permute.xlu0 %621
      %625 = vset.pattern.permute.xlu0 0
      %626 = vperm.xlu0 %625, %v608
      %v627 = vpop.permute.xlu0 %626
      %629 = vmatprep.subr.mxu0 0.0
      %630 = vmatpush1.msra.mxu0 %v585
      %631 = vmatprep.subr.mxu0 0.0
      %632 = vmatpush1.msra.mxu0 %v586
      %633 = vmatprep.subr.mxu0 0.0
      %634 = vmatpush1.msra.mxu0 %v587
      %635 = vmatprep.subr.mxu0 0.0
      %636 = vmatpush1.msra.mxu0 %v588
      %637 = vmatprep.subr.mxu0 0.0
      %638 = vmatpush1.msra.mxu0 %v589
      %639 = vmatprep.subr.mxu0 0.0
      %640 = vmatpush1.msra.mxu0 %v590
      %641 = vmatprep.subr.mxu0 0.0
      %642 = vmatpush1.msra.mxu0 %v591
      %643 = vmatprep.subr.mxu0 0.0
      %644 = vmatpush1.msra.mxu0 %v592
      %645 = vmatprep.subr.mxu0 0.0
      %646 = vmatpush1.msra.mxu0 %v593
      %647 = vmatprep.subr.mxu0 0.0
      %648 = vmatpush1.msra.mxu0 %v594
      %649 = vmatprep.subr.mxu0 0.0
      %650 = vmatpush1.msra.mxu0 %v595
      %651 = vmatprep.subr.mxu0 0.0
      %652 = vmatpush1.msra.mxu0 %v596
      %653 = vmatprep.subr.mxu0 0.0
      %654 = vmatpush1.msra.mxu0 %v597
      %655 = vmatprep.subr.mxu0 0.0
      %656 = vmatpush1.msra.mxu0 %v598
      %657 = vmatprep.subr.mxu0 0.0
      %658 = vmatpush1.msra.mxu0 %v599
      %659 = vmatprep.subr.mxu0 0.0
      %660 = vmatpush1.msra.mxu0 %v600
      %661 = vmatprep.subr.mxu0 0.0
      %662 = vmatpush1.msra.mxu0 0.0
      %663 = vmatprep.subr.mxu0 0.0
      %664 = vmatpush1.msra.mxu0 0.0
      %665 = vmatprep.subr.mxu0 0.0
      %666 = vmatpush1.msra.mxu0 0.0
      %667 = vmatprep.subr.mxu0 0.0
      %668 = vmatpush1.msra.mxu0 0.0
      %669 = vmatprep.subr.mxu0 0.0
      %670 = vmatpush1.msra.mxu0 0.0
      %671 = vmatprep.subr.mxu0 0.0
      %672 = vmatpush1.msra.mxu0 0.0
      %673 = vmatprep.subr.mxu0 0.0
      %674 = vmatpush1.msra.mxu0 0.0
      %675 = vmatprep.subr.mxu0 0.0
      %676 = vmatpush1.msra.mxu0 0.0
      %677 = vmatprep.subr.mxu0 0.0
      %678 = vmatpush1.msra.mxu0 0.0
      %679 = vmatprep.subr.mxu0 0.0
      %680 = vmatpush1.msra.mxu0 0.0
      %681 = vmatprep.subr.mxu0 0.0
      %682 = vmatpush1.msra.mxu0 0.0
      %683 = vmatprep.subr.mxu0 0.0
      %684 = vmatpush1.msra.mxu0 0.0
      %685 = vmatprep.subr.mxu0 0.0
      %686 = vmatpush1.msra.mxu0 0.0
      %687 = vmatprep.subr.mxu0 0.0
      %688 = vmatpush1.msra.mxu0 0.0
      %689 = vmatprep.subr.mxu0 0.0
      %690 = vmatpush1.msra.mxu0 0.0
      %691 = vmatprep.subr.mxu0 0.0
      %692 = vmatpush1.msra.mxu0 0.0
      %693 = vmatprep.mubr.f32.mxu0 0.0
      %694 = vmatmul.mubr.f32.gmra.mrb[0].mxu0 %v601
      %v695 = vpop.f32.mrb[0].mxu0
      %v696 = vadd.f32 %v612, %v695
      %v697 = vpop.f32.mrb[0].mxu0
      %698 = vmatprep.mubr.f32.mxu0 0.0
      %699 = vmatmul.mubr.f32.gmra.mrb[0].mxu0 %v602
      %v700 = vpop.f32.mrb[0].mxu0
      %v701 = vadd.f32 %v617, %v700
      %v702 = vpop.f32.mrb[0].mxu0
      %703 = vmatprep.mubr.f32.mxu0 0.0
      %704 = vmatmul.mubr.f32.gmra.mrb[0].mxu0 %v603
      %v705 = vpop.f32.mrb[0].mxu0
      %v706 = vadd.f32 %v622, %v705
      %v707 = vpop.f32.mrb[0].mxu0
      %708 = vmatprep.mubr.f32.mxu0 0.0
      %709 = vmatmul.mubr.f32.gmra.mrb[0].mxu0 %v604
      %v710 = vpop.f32.mrb[0].mxu0
      %v711 = vadd.f32 %v627, %v710
      %v712 = vpop.f32.mrb[0].mxu0
      %713 = vdwg.mxu0
      %v714 = vsel %vm274, 1, 0
      %vm715 = vcmp.eq.s32.totalorder %v714, 1
      %v716 = vsel %vm715, %v696, -1e+30
      %v717 = vsel %vm715, %v701, -1e+30
      %v718 = vsel %vm715, %v706, -1e+30
      %v719 = vsel %vm715, %v711, -1e+30
      %v720 = vld [vmem:[#allocation2] sm:$0xff]
      %v721 = vld [vmem:[#allocation2 + $0x8] sm:$0xff]
      %v722 = vld [vmem:[#allocation2 + $0x10] sm:$0xff]
      %v723 = vld [vmem:[#allocation2 + $0x18] sm:$0xff]
      %724 = vmax.xlane.f32.xlu0 %v716
      %v725 = vpop.xlane.xlu0 %724
      %726 = vmax.xlane.f32.xlu0 %v717
      %v727 = vpop.xlane.xlu0 %726
      %728 = vmax.xlane.f32.xlu0 %v718
      %v729 = vpop.xlane.xlu0 %728
      %730 = vmax.xlane.f32.xlu0 %v719
      %v731 = vpop.xlane.xlu0 %730
      %v732 = vmax.f32 %v720, %v725
      %v733 = vmax.f32 %v721, %v727
      %v734 = vmax.f32 %v722, %v729
      %v735 = vmax.f32 %v723, %v731
      %v736 = vsub.f32 %v720, %v732
      %v737 = vsub.f32 %v721, %v733
      %v738 = vsub.f32 %v722, %v734
      %v739 = vsub.f32 %v723, %v735
      %v740 = vmul.f32 %v736, 1.442695
      %v741 = vpow.pop %v740
      %v742 = vmul.f32 %v737, 1.442695
      %v743 = vpow.pop %v742
      %v744 = vmul.f32 %v738, 1.442695
      %v745 = vpow.pop %v744
      %v746 = vmul.f32 %v739, 1.442695
      %v747 = vpow.pop %v746
      %749 = vset.pattern.permute.xlu0 0
      %750 = vperm.xlu0 %749, %v732
      %v751 = vpop.permute.xlu0 %750
      %754 = vset.pattern.permute.xlu0 0
      %755 = vperm.xlu0 %754, %v733
      %v756 = vpop.permute.xlu0 %755
      %759 = vset.pattern.permute.xlu0 0
      %760 = vperm.xlu0 %759, %v734
      %v761 = vpop.permute.xlu0 %760
      %764 = vset.pattern.permute.xlu0 0
      %765 = vperm.xlu0 %764, %v735
      %v766 = vpop.permute.xlu0 %765
      %v768 = vsub.f32 %v716, %v751
      %v769 = vsub.f32 %v717, %v756
      %v770 = vsub.f32 %v718, %v761
      %v771 = vsub.f32 %v719, %v766
      %v772 = vmul.f32 %v768, 1.442695
      %v773 = vpow.pop %v772
      %v774 = vmul.f32 %v769, 1.442695
      %v775 = vpow.pop %v774
      %v776 = vmul.f32 %v770, 1.442695
      %v777 = vpow.pop %v776
      %v778 = vmul.f32 %v771, 1.442695
      %v779 = vpow.pop %v778
      %v780 = vmul.f32 %v275, %v773
      %v781 = vmul.f32 %v276, %v775
      %v782 = vmul.f32 %v277, %v777
      %v783 = vmul.f32 %v278, %v779
      %v784 = vld [vmem:[#allocation3] sm:$0xff]
      %v785 = vld [vmem:[#allocation3 + $0x8] sm:$0xff]
      %v786 = vld [vmem:[#allocation3 + $0x10] sm:$0xff]
      %v787 = vld [vmem:[#allocation3 + $0x18] sm:$0xff]
      %v788 = vmul.f32 %v741, %v784
      %v789 = vmul.f32 %v743, %v785
      %v790 = vmul.f32 %v745, %v786
      %v791 = vmul.f32 %v747, %v787
      %792 = vadd.xlane.f32.xlu0 %v773
      %v793 = vpop.xlane.xlu0 %792
      %794 = vadd.xlane.f32.xlu0 %v775
      %v795 = vpop.xlane.xlu0 %794
      %796 = vadd.xlane.f32.xlu0 %v777
      %v797 = vpop.xlane.xlu0 %796
      %798 = vadd.xlane.f32.xlu0 %v779
      %v799 = vpop.xlane.xlu0 %798
      %v800 = vadd.f32 %v788, %v793
      %v801 = vadd.f32 %v789, %v795
      %v802 = vadd.f32 %v790, %v797
      %v803 = vadd.f32 %v791, %v799
      %vm804 = vcmask 7168
      %805 = vst.msk [vmem:[#allocation3] sm:$0xff] %vm804, %v800
      %806 = vst.msk [vmem:[#allocation3 + $0x8] sm:$0xff] %vm804, %v801
      %807 = vst.msk [vmem:[#allocation3 + $0x10] sm:$0xff] %vm804, %v802
      %808 = vst.msk [vmem:[#allocation3 + $0x18] sm:$0xff] %vm804, %v803
      %v809 = vld [vmem:[#allocation4] sm:$0xff]
      %v810 = vld [vmem:[#allocation4 + $0x8] sm:$0xff]
      %v811 = vld [vmem:[#allocation4 + $0x10] sm:$0xff]
      %v812 = vld [vmem:[#allocation4 + $0x18] sm:$0xff]
      %v813 = vmul.f32 %v741, %v809
      %v814 = vmul.f32 %v743, %v810
      %v815 = vmul.f32 %v745, %v811
      %v816 = vmul.f32 %v747, %v812
      %817 = vadd.xlane.f32.xlu0 %v780
      %v818 = vpop.xlane.xlu0 %817
      %819 = vadd.xlane.f32.xlu0 %v781
      %v820 = vpop.xlane.xlu0 %819
      %821 = vadd.xlane.f32.xlu0 %v782
      %v822 = vpop.xlane.xlu0 %821
      %823 = vadd.xlane.f32.xlu0 %v783
      %v824 = vpop.xlane.xlu0 %823
      %v825 = vadd.f32 %v813, %v818
      %v826 = vadd.f32 %v814, %v820
      %v827 = vadd.f32 %v815, %v822
      %v828 = vadd.f32 %v816, %v824
      %829 = vst.msk [vmem:[#allocation4] sm:$0xff] %vm804, %v825
      %830 = vst.msk [vmem:[#allocation4 + $0x8] sm:$0xff] %vm804, %v826
      %831 = vst.msk [vmem:[#allocation4 + $0x10] sm:$0xff] %vm804, %v827
      %832 = vst.msk [vmem:[#allocation4 + $0x18] sm:$0xff] %vm804, %v828
      %v833 = vld [vmem:[#allocation5] sm:$0xff]
      %v834 = vld [vmem:[#allocation5 + $0x8] sm:$0xff]
      %v835 = vld [vmem:[#allocation5 + $0x10] sm:$0xff]
      %v836 = vld [vmem:[#allocation5 + $0x18] sm:$0xff]
      %v837 = vmul.f32 %v741, %v833
      %v838 = vmul.f32 %v743, %v834
      %v839 = vmul.f32 %v745, %v835
      %v840 = vmul.f32 %v747, %v836
      %v841 = vmul.f32 %v275, %v780
      %v842 = vmul.f32 %v276, %v781
      %v843 = vmul.f32 %v277, %v782
      %v844 = vmul.f32 %v278, %v783
      %845 = vadd.xlane.f32.xlu0 %v841
      %v846 = vpop.xlane.xlu0 %845
      %847 = vadd.xlane.f32.xlu0 %v842
      %v848 = vpop.xlane.xlu0 %847
      %849 = vadd.xlane.f32.xlu0 %v843
      %v850 = vpop.xlane.xlu0 %849
      %851 = vadd.xlane.f32.xlu0 %v844
      %v852 = vpop.xlane.xlu0 %851
      %v853 = vadd.f32 %v837, %v846
      %v854 = vadd.f32 %v838, %v848
      %v855 = vadd.f32 %v839, %v850
      %v856 = vadd.f32 %v840, %v852
      %857 = vst.msk [vmem:[#allocation5] sm:$0xff] %vm804, %v853
      %858 = vst.msk [vmem:[#allocation5 + $0x8] sm:$0xff] %vm804, %v854
      %859 = vst.msk [vmem:[#allocation5 + $0x10] sm:$0xff] %vm804, %v855
      %860 = vst.msk [vmem:[#allocation5 + $0x18] sm:$0xff] %vm804, %v856
      %861 = vst.msk [vmem:[#allocation2] sm:$0xff] %vm804, %v732
      %862 = vst.msk [vmem:[#allocation2 + $0x8] sm:$0xff] %vm804, %v733
      %863 = vst.msk [vmem:[#allocation2 + $0x10] sm:$0xff] %vm804, %v734
      %864 = vst.msk [vmem:[#allocation2 + $0x18] sm:$0xff] %vm804, %v735
      // Predicated region
      $region45: #{tpu_custom_call.1} parent=39 // pred_check
        %p865 = pneg %p248
      $region46: #{tpu_custom_call.1} parent=39 // pred_check_branch
        %867 = sbr.rel (%p865) target = $region48
      $region47: #{tpu_custom_call.1} parent=39 // pred_region
        %v868 = vld [vmem:[#allocation3] sm:$0xff]
        %v869 = vld [vmem:[#allocation3 + $0x8] sm:$0xff]
        %v870 = vld [vmem:[#allocation3 + $0x10] sm:$0xff]
        %v871 = vld [vmem:[#allocation3 + $0x18] sm:$0xff]
        %v872 = vrcp.pop %v868
        %v873 = vmul.f32 1.0, %v872
        %v874 = vrcp.pop %v869
        %v875 = vmul.f32 1.0, %v874
        %v876 = vrcp.pop %v870
        %v877 = vmul.f32 1.0, %v876
        %v878 = vrcp.pop %v871
        %v879 = vmul.f32 1.0, %v878
        %v880 = vld [vmem:[#allocation4] sm:$0xff]
        %v881 = vld [vmem:[#allocation4 + $0x8] sm:$0xff]
        %v882 = vld [vmem:[#allocation4 + $0x10] sm:$0xff]
        %v883 = vld [vmem:[#allocation4 + $0x18] sm:$0xff]
        %v884 = vmul.f32 %v880, %v873
        %v885 = vmul.f32 %v881, %v875
        %v886 = vmul.f32 %v882, %v877
        %v887 = vmul.f32 %v883, %v879
        %v888 = vld [vmem:[#allocation5] sm:$0xff]
        %v889 = vld [vmem:[#allocation5 + $0x8] sm:$0xff]
        %v890 = vld [vmem:[#allocation5 + $0x10] sm:$0xff]
        %v891 = vld [vmem:[#allocation5 + $0x18] sm:$0xff]
        %v892 = vmul.f32 %v888, %v873
        %v893 = vmul.f32 %v889, %v875
        %v894 = vmul.f32 %v890, %v877
        %v895 = vmul.f32 %v891, %v879
        %v896 = vmul.f32 %v884, %v884
        %v897 = vmul.f32 %v885, %v885
        %v898 = vmul.f32 %v886, %v886
        %v899 = vmul.f32 %v887, %v887
        %v900 = vsub.f32 %v892, %v896
        %v901 = vsub.f32 %v893, %v897
        %v902 = vsub.f32 %v894, %v898
        %v903 = vsub.f32 %v895, %v899
        %v904 = vmax.f32 %v900, 1e-05
        %v905 = vmax.f32 %v901, 1e-05
        %v906 = vmax.f32 %v902, 1e-05
        %v907 = vmax.f32 %v903, 1e-05
        %v908 = vrsqrt.pop %v904
        %v909 = vmul.f32 %v904, %v908
        %vm910 = vcmp.eq.f32.partialorder %v904, inf
        %v911 = vsel %vm910, %v904, %v909
        %vm912 = vcmp.eq.f32.partialorder %v904, 0.0
        %v913 = vand.u32 %v904, 2147483648
        %v914 = vsel %vm912, %v913, %v911
        %v915 = vrsqrt.pop %v905
        %v916 = vmul.f32 %v905, %v915
        %vm917 = vcmp.eq.f32.partialorder %v905, inf
        %v918 = vsel %vm917, %v905, %v916
        %vm919 = vcmp.eq.f32.partialorder %v905, 0.0
        %v920 = vand.u32 %v905, 2147483648
        %v921 = vsel %vm919, %v920, %v918
        %v922 = vrsqrt.pop %v906
        %v923 = vmul.f32 %v906, %v922
        %vm924 = vcmp.eq.f32.partialorder %v906, inf
        %v925 = vsel %vm924, %v906, %v923
        %vm926 = vcmp.eq.f32.partialorder %v906, 0.0
        %v927 = vand.u32 %v906, 2147483648
        %v928 = vsel %vm926, %v927, %v925
        %v929 = vrsqrt.pop %v907
        %v930 = vmul.f32 %v907, %v929
        %vm931 = vcmp.eq.f32.partialorder %v907, inf
        %v932 = vsel %vm931, %v907, %v930
        %vm933 = vcmp.eq.f32.partialorder %v907, 0.0
        %v934 = vand.u32 %v907, 2147483648
        %v935 = vsel %vm933, %v934, %v932
        %936 = vst.msk [vmem:[%s247] sm:$0xff] %vm804, %v884
        %937 = vst.msk [vmem:[%s247 + $0x8] sm:$0xff] %vm804, %v885
        %938 = vst.msk [vmem:[%s247 + $0x10] sm:$0xff] %vm804, %v886
        %939 = vst.msk [vmem:[%s247 + $0x18] sm:$0xff] %vm804, %v887
        %940 = vst.msk [vmem:[%s247 + $0x20] sm:$0xff] %vm804, %v914
        %941 = vst.msk [vmem:[%s247 + $0x28] sm:$0xff] %vm804, %v921
        %942 = vst.msk [vmem:[%s247 + $0x30] sm:$0xff] %vm804, %v928
        %943 = vst.msk [vmem:[%s247 + $0x38] sm:$0xff] %vm804, %v935
      $region48: #{tpu_custom_call.1} parent=39 // pred_fallthru
        _
      %p944 = scmp.lt.s32.totalorder %s20, 1
      %s945 = scalar_select %p944, %s20, 1
      %s946 = smul.addr %s945, 8
      %s947 = smul.addr %s946, 8
      %s948 = scalar_lea.vmem %s5, %s947
      // Predicated region
      $region49: #{tpu_custom_call.1} parent=39 // pred_check
        %p949 = pneg %p158
      $region50: #{tpu_custom_call.1} parent=39 // pred_check_branch
        %951 = sbr.rel (%p949) target = $region52
      $region51: #{tpu_custom_call.1} parent=39 // pred_region
        _
      $region52: #{tpu_custom_call.1} parent=39 // pred_fallthru
        _
    $region40: #{tpu_custom_call.1} parent=5 // pred_fallthru
      _
    %p952 = scmp.le.s32.totalorder 2, %s11
    // Predicated region
    $region53: #{tpu_custom_call.1} parent=5 // pred_check
      %p953 = pneg %p952
    $region54: #{tpu_custom_call.1} parent=5 // pred_check_branch
      %955 = sbr.rel (%p953) target = $region56
    $region55: #{tpu_custom_call.1} parent=5 // pred_region
      %s956 = ssub.s32 %s11, 2
      // Predicated region
      $region57: #{tpu_custom_call.1} parent=55 // pred_check
        %p957 = pneg %p164
      $region58: #{tpu_custom_call.1} parent=55 // pred_check_branch
        %959 = sbr.rel (%p957) target = $region60
      $region59: #{tpu_custom_call.1} parent=55 // pred_region
        %p960 = scmp.lt.s32.totalorder %s22, 1
        %s961 = scalar_select %p960, %s22, 1
        %s962 = smul.addr %s961, 8
        %s963 = smul.addr %s962, 8
        %s964 = scalar_lea.vmem %s5, %s963
      $region60: #{tpu_custom_call.1} parent=55 // pred_fallthru
        _
    $region56: #{tpu_custom_call.1} parent=5 // pred_fallthru
      _
  $region6: #{tpu_custom_call.1} parent=0 // loop_footer
    %s15 = sadd.s32 1, %s11
  $region7: #{tpu_custom_call.1} parent=0 // loop_footer_branch
    %10 = sbr.rel target = $region3
  $region8: #{tpu_custom_call.1} parent=0 // loop_exit
    _

</llo_original>
